<compile_context>
chip_gen: v7x
topology: tpu7x:2x2x1
jax: 0.10.0
libtpu: 0.0.40
codegen_flags: <defaults>
</compile_context>

<pallas_src>
import functools
import math

import jax
import jax.numpy as jnp
from jax.experimental import pallas as pl
from jax.experimental.pallas import tpu as pltpu


# ---------------------------------------------------------------------------
# Kernels
# ---------------------------------------------------------------------------

def _rope_kernel_roll(x_ref, cosf_ref, sinf_ref, o_ref, *, half):
    """dims == head_dim and head_dim % 128 == 0.

    Half-swap via an XLU lane roll of the raw-dtype block; f32 math; single
    full-width unmasked store:   o = x * [cos|cos] + roll(x, half) * [-sin|sin]
    """
    x = x_ref[...]                                         # (TB, TS, D), raw dtype
    xr = pltpu.roll(x, shift=half, axis=x.ndim - 1)        # [x2 | x1]
    out = (x.astype(jnp.float32) * cosf_ref[...]
           + xr.astype(jnp.float32) * sinf_ref[...])
    o_ref[...] = out.astype(o_ref.dtype)


def _rope_kernel_concat(x_ref, cosf_ref, sinf_ref, o_ref, *, dims, half):
    """General path: head_dim not 128-aligned and/or dims < head_dim.

    The swapped partner is built with one concat on the raw dtype; the trig
    tables are padded to full width (cos tail = 1, sin tail = 0), so the
    pass-through tail needs no separate masked store -- one lane-dense write.
    """
    x = x_ref[...]                                         # (TB, TS, D)
    pieces = [x[:, :, half:dims], x[:, :, :half]]
    if dims < x.shape[-1]:
        pieces.append(x[:, :, dims:])                      # tail: * sin=0, * cos=1
    partner = jnp.concatenate(pieces, axis=-1)
    out = (x.astype(jnp.float32) * cosf_ref[...]
           + partner.astype(jnp.float32) * sinf_ref[...])
    o_ref[...] = out.astype(o_ref.dtype)


# ---------------------------------------------------------------------------
# Generation-aware tiling heuristics
# ---------------------------------------------------------------------------

def _tpu_caps():
    """Best-effort (vmem_capacity_bytes, num_tensorcores); conservative fallback."""
    vmem_bytes = 64 * 1024 * 1024          # v7x-sized fallback (safe everywhere)
    num_cores = 1                          # v5e/v6e-style fallback
    try:
        info = pltpu.get_tpu_info()
        vmem_bytes = int(getattr(info, "vmem_capacity_bytes", vmem_bytes))
        for name in ("num_cores", "core_count", "num_tensorcores",
                     "tensorcores_per_chip"):
            val = getattr(info, name, None)
            if isinstance(val, int) and val > 0:
                num_cores = val
                break
    except Exception:
        pass
    return vmem_bytes, num_cores


def _target_block_bytes(itemsize, vmem_bytes):
    """Largest reasonable x-block (bytes) given physical VMEM.

    Per-element cost: 2-in + 2-out double buffers (4 * itemsize) plus ~3
    block-sized f32 temporaries (upcast, swapped partner, f32 result) inside
    the kernel; ~4 MiB reserved for the trig tables / headroom; everything
    kept under ~60% of physical VMEM.  Capped at 8 MiB (diminishing returns).
    """
    usable = max(8 * 1024 * 1024, int(0.6 * vmem_bytes) - 4 * 1024 * 1024)
    per_elem = 4 * itemsize + 3 * 4
    max_bytes = (usable // per_elem) * itemsize
    return int(max(512 * 1024, min(8 * 1024 * 1024, max_bytes)))


def _pick_seq_tile(S, D, itemsize, target_bytes):
    """Largest S tile (multiple of 8, dividing S) whose (ts, D) slab fits the
    per-block budget; full S when one head already fits (or nothing divides)."""
    if S * D * itemsize <= target_bytes:
        return S
    max_ts = target_bytes // max(1, D * itemsize)
    best, t = 0, 8
    while t <= min(S, max_ts):
        if S % t == 0:
            best = t
        t += 8
    # TODO(synk): very long sequences with no multiple-of-8 divisor fall back
    # to the full sequence (may exceed the per-block budget).
    return best if best > 0 else S


def _pick_block_heads(n_heads, per_head_bytes, target_bytes, num_cores):
    """Largest per-block head count whose x-block fits the budget and divides
    n_heads.  Only on multi-TensorCore parts do we additionally prefer enough
    grid steps (>= ~4 per core) for pipeline steady state; on 1-TC chips
    (v5e/v6e) shrinking the block is pure per-step overhead."""
    max_tb = max(1, min(n_heads, target_bytes // max(1, per_head_bytes)))
    divs = [t for t in range(1, n_heads + 1) if n_heads % t == 0 and t <= max_tb]
    if not divs:
        return 1
    if num_cores > 1:
        for pred in (
            lambda t: (n_heads // t) >= 4 * num_cores and (n_heads // t) % num_cores == 0,
            lambda t: (n_heads // t) >= num_cores and (n_heads // t) % num_cores == 0,
            lambda t: (n_heads // t) >= num_cores,
        ):
            cands = [t for t in divs if pred(t)]
            if cands:
                return max(cands)
    return max(divs)


# ---------------------------------------------------------------------------
# Wrapper
# ---------------------------------------------------------------------------

def rope_forward(x, dims, offset=0, base=10000.0):
    """Pallas TPU implementation of RoPE.forward (traditional=False)."""
    if dims % 2 != 0:
        raise ValueError("dims must be even")
    shape = x.shape
    S, D = shape[-2], shape[-1]
    if dims > D:
        raise ValueError("dims must be <= head_dim")
    n_heads = 1
    for d in shape[:-2]:
        n_heads *= d
    xf = x.reshape(n_heads, S, D)
    half = dims // 2

    # Trig tables once, in f32, outside the kernel (no per-step EUP work).
    # Full-width layout so the kernel emits a single unmasked store:
    #   cosF = [cos | cos | 1...1],  sinF = [-sin | sin | 0...0]
    positions = jnp.arange(offset, S + offset, dtype=jnp.float32)
    freqs = jnp.exp(-jnp.arange(0, half, dtype=jnp.float32) * (math.log(base) / half))
    theta = positions[:, None] * freqs[None, :]            # (S, half)
    cos = jnp.cos(theta)
    sin = jnp.sin(theta)
    cos_parts = [cos, cos]
    sin_parts = [-sin, sin]
    if dims < D:
        cos_parts.append(jnp.ones((S, D - dims), jnp.float32))
        sin_parts.append(jnp.zeros((S, D - dims), jnp.float32))
    cosf = jnp.concatenate(cos_parts, axis=-1)              # (S, D) f32
    sinf = jnp.concatenate(sin_parts, axis=-1)              # (S, D) f32

    # Generation-aware tiling.
    vmem_bytes, num_cores = _tpu_caps()
    itemsize = x.dtype.itemsize
    target_bytes = _target_block_bytes(itemsize, vmem_bytes)
    ts = _pick_seq_tile(S, D, itemsize, target_bytes)
    if ts == S:
        tb = _pick_block_heads(n_heads, S * D * itemsize, target_bytes, num_cores)
    else:
        tb = 1                                               # one (ts, D) slab / step
    # Sequence axis OUTER, head axis INNER: the trig block index is constant
    # across the inner head loop, so the tables are fetched once per S tile
    # (and exactly once when the sequence is not tiled) and stay VMEM-resident.
    grid = (S // ts, n_heads // tb)

    if dims == D and D % 128 == 0:
        kernel = functools.partial(_rope_kernel_roll, half=half)
    else:
        kernel = functools.partial(_rope_kernel_concat, dims=dims, half=half)

    out = pl.pallas_call(
        kernel,
        out_shape=jax.ShapeDtypeStruct((n_heads, S, D), x.dtype),
        grid_spec=pl.GridSpec(
            grid=grid,
            in_specs=[
                pl.BlockSpec((tb, ts, D), lambda s, b: (b, s, 0)),
                pl.BlockSpec((ts, D), lambda s, b: (s, 0)),
                pl.BlockSpec((ts, D), lambda s, b: (s, 0)),
            ],
            out_specs=pl.BlockSpec((tb, ts, D), lambda s, b: (b, s, 0)),
        ),
        compiler_params=pltpu.CompilerParams(
            dimension_semantics=("parallel", "parallel"),
            vmem_limit_bytes=int(0.75 * vmem_bytes),
        ),
    )(xf, cosf, sinf)
    return out.reshape(shape)


# ---------------------------------------------------------------------------
# Pure-JAX reference + self-test
# ---------------------------------------------------------------------------

def rope_reference(x, dims, offset=0, base=10000.0):
    """Pure-JAX reference mirroring the PyTorch module (f32 math, like kernel)."""
    shape = x.shape
    S, D = shape[-2], shape[-1]
    xf = x.reshape(-1, S, D).astype(jnp.float32)
    half = dims // 2
    positions = jnp.arange(offset, S + offset, dtype=jnp.float32)
    freqs = jnp.exp(-jnp.arange(0, half, dtype=jnp.float32) * (math.log(base) / half))
    theta = positions[:, None] * freqs[None, :]
    costheta = jnp.cos(theta)
    sintheta = jnp.sin(theta)
    x1 = xf[..., :half]
    x2 = xf[..., half:dims]
    rx1 = x1 * costheta - x2 * sintheta
    rx2 = x1 * sintheta + x2 * costheta
    if dims < D:
        rx = jnp.concatenate([rx1, rx2, xf[..., dims:]], axis=-1)
    else:
        rx = jnp.concatenate([rx1, rx2], axis=-1)
    return rx.astype(x.dtype).reshape(shape)


if __name__ == "__main__":
    key = jax.random.PRNGKey(0)
    k1, k2, k3, k4 = jax.random.split(key, 4)

    def _check(x, dims, offset, tol):
        out = jax.block_until_ready(rope_forward(x, dims=dims, offset=offset))
        ref = rope_reference(x, dims=dims, offset=offset)
        assert out.shape == x.shape and out.dtype == x.dtype
        err = jnp.max(jnp.abs(out.astype(jnp.float32) - ref.astype(jnp.float32)))
        assert jnp.allclose(out.astype(jnp.float32), ref.astype(jnp.float32),
                            atol=tol, rtol=tol), float(err)

    # 1) Full rotation, 128-lane head_dim -> pltpu.roll (XLU) fast path.
    x1 = jax.random.normal(k1, (2, 4, 8, 128), dtype=jnp.float32)
    _check(x1, dims=128, offset=0, tol=1e-5)

    # 2) Same fast path, bf16 input (f32 math inside the kernel), with offset.
    x2 = jax.random.normal(k2, (2, 2, 16, 128), dtype=jnp.bfloat16)
    _check(x2, dims=128, offset=2, tol=2e-2)

    # 3) Full rotation, small head_dim (<128 lanes) -> concat-swap path.
    x3 = jax.random.normal(k3, (2, 4, 8, 32), dtype=jnp.float32)
    _check(x3, dims=32, offset=0, tol=1e-5)

    # 4) Partial rotation (dims < head_dim) -> padded tables, single store.
    x4 = jax.random.normal(k4, (2, 4, 8, 32), dtype=jnp.float32)
    _check(x4, dims=16, offset=3, tol=1e-5)

    print("KERNEL_OK")
</pallas_src>

<mosaic_0001>
module attributes {stable_mosaic.version = 11 : i64} {
  func.func @_rope_kernel_roll(%arg0: i32, %arg1: i32, %arg2: memref<8x8x128xf32, #tpu.memory_space<vmem>>, %arg3: memref<8x128xf32, #tpu.memory_space<vmem>>, %arg4: memref<8x128xf32, #tpu.memory_space<vmem>>, %arg5: memref<8x8x128xf32, #tpu.memory_space<vmem>>) attributes {dimension_semantics = [#tpu.dimension_semantics<parallel>, #tpu.dimension_semantics<parallel>], iteration_bounds = array<i64: 1, 1>, scalar_prefetch = 0 : i64, scratch_operands = 0 : i64, tpu.core_type = #tpu.core_type<tc>, window_params = [{transform_indices = @transform_0, window_bounds = array<i64: 8, 8, 128>}, {transform_indices = @transform_1, window_bounds = array<i64: 8, 128>}, {transform_indices = @transform_2, window_bounds = array<i64: 8, 128>}, {transform_indices = @transform_3, window_bounds = array<i64: 8, 8, 128>}]} {
    %c0 = arith.constant 0 : index
    %c0_0 = arith.constant 0 : index
    %c0_1 = arith.constant 0 : index
    %0 = vector.load %arg2[%c0, %c0_0, %c0_1] : memref<8x8x128xf32, #tpu.memory_space<vmem>>, vector<8x8x128xf32>
    %c64_i32 = arith.constant 64 : i32
    %1 = tpu.dynamic_rotate %0 by %c64_i32 dim 2 : vector<8x8x128xf32>, i32 -> vector<8x8x128xf32>
    %c0_2 = arith.constant 0 : index
    %c0_3 = arith.constant 0 : index
    %2 = vector.load %arg3[%c0_2, %c0_3] : memref<8x128xf32, #tpu.memory_space<vmem>>, vector<8x128xf32>
    %3 = vector.shape_cast %2 : vector<8x128xf32> to vector<1x8x128xf32>
    %4 = vector.broadcast %3 : vector<1x8x128xf32> to vector<8x8x128xf32>
    %5 = arith.mulf %0, %4 : vector<8x8x128xf32>
    %c0_4 = arith.constant 0 : index
    %c0_5 = arith.constant 0 : index
    %6 = vector.load %arg4[%c0_4, %c0_5] : memref<8x128xf32, #tpu.memory_space<vmem>>, vector<8x128xf32>
    %7 = vector.shape_cast %6 : vector<8x128xf32> to vector<1x8x128xf32>
    %8 = vector.broadcast %7 : vector<1x8x128xf32> to vector<8x8x128xf32>
    %9 = arith.mulf %1, %8 : vector<8x8x128xf32>
    %10 = arith.addf %5, %9 : vector<8x8x128xf32>
    %c0_6 = arith.constant 0 : index
    %c0_7 = arith.constant 0 : index
    %c0_8 = arith.constant 0 : index
    %11 = vector.load %arg5[%c0_6, %c0_7, %c0_8] : memref<8x8x128xf32, #tpu.memory_space<vmem>>, vector<8x8x128xf32>
    tpu.vector_store %arg5[%c0_6, %c0_7, %c0_8], %10 {strides = array<i32>} : memref<8x8x128xf32, #tpu.memory_space<vmem>>, vector<8x8x128xf32>,
    return
  }
  func.func @transform_0(%arg0: i32, %arg1: i32) -> (i32, i32, i32) {
    %c0_i32 = arith.constant 0 : i32
    %c0_i32_0 = arith.constant 0 : i32
    return %arg1, %arg0, %c0_i32 : i32, i32, i32
  }
  func.func @transform_1(%arg0: i32, %arg1: i32) -> (i32, i32) {
    %c0_i32 = arith.constant 0 : i32
    %c0_i32_0 = arith.constant 0 : i32
    return %arg0, %c0_i32 : i32, i32
  }
  func.func @transform_2(%arg0: i32, %arg1: i32) -> (i32, i32) {
    %c0_i32 = arith.constant 0 : i32
    %c0_i32_0 = arith.constant 0 : i32
    return %arg0, %c0_i32 : i32, i32
  }
  func.func @transform_3(%arg0: i32, %arg1: i32) -> (i32, i32, i32) {
    %c0_i32 = arith.constant 0 : i32
    %c0_i32_0 = arith.constant 0 : i32
    return %arg1, %arg0, %c0_i32 : i32, i32, i32
  }
}

</mosaic_0001>

<llo_original>
// kernel: tpu_custom_call.1
$region0: #{tpu_custom_call.1}
  #allocation0 [shape = 'u32[]', space=smem, size = 0x4, offset = 0x4, fixed_abs, tag = 'smem constant byte address 0x4 - core index']
  #allocation1 [shape = 'u32[144,128]{1,0:T(1,128)}', space=vmem, size = 0x12000, scoped, tag = 'internal scratch']
  %s0 = inlined_call_operand.hbm [shape: f32[8,8,128], index: 0, kind: input, shape index: {}]
  %s1 = inlined_call_operand.hbm [shape: f32[8,128], index: 1, kind: input, shape index: {}]
  %s2 = inlined_call_operand.hbm [shape: f32[8,128], index: 2, kind: input, shape index: {}]
  %s3 = inlined_call_operand.hbm [shape: f32[8,8,128], index: 3, kind: output, shape index: {}]
  %s4 = sld [smem:[#allocation0]]
  $region34: #{tpu_custom_call.1} parent=0
    _
  %s6 = ssub.s32 1, %s4
  %s7 = scalar_select 0, %s6, %s4
  $region1: #{tpu_custom_call.1} parent=0
    #allocation2 [shape = 'u8[32768]{0}', space=vmem, size = 0x8000, scoped, tag = 'input window, operand 0, single buffered']
    #allocation3 [shape = 's32[1]{0}', space=sflag, size = 0x4, scoped, tag = 'scoped memory for tpu_custom_call.1']
    #allocation4 [shape = 's32[1]{0}', space=sflag, size = 0x4, scoped, tag = 'scoped memory for tpu_custom_call.1']
    #allocation5 [shape = 'u8[4096]{0}', space=vmem, size = 0x1000, scoped, tag = 'input window, operand 1, single buffered']
    #allocation6 [shape = 's32[1]{0}', space=sflag, size = 0x4, scoped, tag = 'scoped memory for tpu_custom_call.1']
    #allocation7 [shape = 'u8[4096]{0}', space=vmem, size = 0x1000, scoped, tag = 'input window, operand 2, single buffered']
    #allocation8 [shape = 'u8[32768]{0}', space=vmem, size = 0x8000, scoped, tag = 'output window, operand 0, single buffered']
    %8 = vsyncpa [#allocation3], 0
    %9 = vsyncpa [#allocation6], 0
    %10 = vsyncpa [#allocation4], 0
    // Predicated region
    $region2: #{tpu_custom_call.1} parent=1 // pred_check
      _
    $region3: #{tpu_custom_call.1} parent=1 // pred_check_branch
      %12 = sbr.rel (0) target = $region5
    $region4: #{tpu_custom_call.1} parent=1 // pred_region
      %s14 = ssub.s32 1024, 1024
      %15 = vsyncadd [#allocation3], %s14
      %s16 = sshll.u32 [#allocation2], 4
      %s17 = int_to_ptr.vmem [resolvable:$true] %s16
      %22 = dma.hbm_to_vmem [thread:$0]  %s0, 1024, %s17, [#allocation3], 128, 128, 8
    $region5: #{tpu_custom_call.1} parent=1 // pred_fallthru
      _
    // Predicated region
    $region6: #{tpu_custom_call.1} parent=1 // pred_check
      _
    $region7: #{tpu_custom_call.1} parent=1 // pred_check_branch
      %24 = sbr.rel (0) target = $region9
    $region8: #{tpu_custom_call.1} parent=1 // pred_region
      %s26 = ssub.s32 128, 128
      %27 = vsyncadd [#allocation6], %s26
      %s29 = sshll.u32 [#allocation5], 4
      %s30 = int_to_ptr.vmem [resolvable:$true] %s29
      %32 = dma.hbm_to_vmem [thread:$0]  %s1, 128, %s30, [#allocation6]
    $region9: #{tpu_custom_call.1} parent=1 // pred_fallthru
      _
    // Predicated region
    $region10: #{tpu_custom_call.1} parent=1 // pred_check
      _
    $region11: #{tpu_custom_call.1} parent=1 // pred_check_branch
      %34 = sbr.rel (0) target = $region13
    $region12: #{tpu_custom_call.1} parent=1 // pred_region
      %s36 = ssub.s32 128, 128
      %37 = vsyncadd [#allocation6], %s36
      %s39 = sshll.u32 [#allocation7], 4
      %s40 = int_to_ptr.vmem [resolvable:$true] %s39
      %42 = dma.hbm_to_vmem [thread:$0]  %s2, 128, %s40, [#allocation6]
    $region13: #{tpu_custom_call.1} parent=1 // pred_fallthru
      _
    // Predicated region
    $region14: #{tpu_custom_call.1} parent=1 // pred_check
      _
    $region15: #{tpu_custom_call.1} parent=1 // pred_check_branch
      %44 = sbr.rel (0) target = $region17
    $region16: #{tpu_custom_call.1} parent=1 // pred_region
      %45 = dma.done [#allocation3], 1024
    $region17: #{tpu_custom_call.1} parent=1 // pred_fallthru
      _
    // Predicated region
    $region18: #{tpu_custom_call.1} parent=1 // pred_check
      _
    $region19: #{tpu_custom_call.1} parent=1 // pred_check_branch
      %47 = sbr.rel (0) target = $region21
    $region20: #{tpu_custom_call.1} parent=1 // pred_region
      %48 = dma.done [#allocation6], 128
    $region21: #{tpu_custom_call.1} parent=1 // pred_fallthru
      _
    // Predicated region
    $region22: #{tpu_custom_call.1} parent=1 // pred_check
      _
    $region23: #{tpu_custom_call.1} parent=1 // pred_check_branch
      %50 = sbr.rel (0) target = $region25
    $region24: #{tpu_custom_call.1} parent=1 // pred_region
      %51 = dma.done [#allocation6], 128
    $region25: #{tpu_custom_call.1} parent=1 // pred_fallthru
      _
    %v52 = vld [vmem:[#allocation2] sm:$0xff]
    %v53 = vld [vmem:[#allocation2 + $0x8] sm:$0xff]
    %v54 = vld [vmem:[#allocation2 + $0x10] sm:$0xff]
    %v55 = vld [vmem:[#allocation2 + $0x18] sm:$0xff]
    %v56 = vld [vmem:[#allocation2 + $0x20] sm:$0xff]
    %v57 = vld [vmem:[#allocation2 + $0x28] sm:$0xff]
    %v58 = vld [vmem:[#allocation2 + $0x30] sm:$0xff]
    %v59 = vld [vmem:[#allocation2 + $0x38] sm:$0xff]
    %60 = vrot.lane.b32.xlu0 %v52, 64
    %v61 = vpop.permute.xlu0 %60
    %62 = vrot.lane.b32.xlu0 %v53, 64
    %v63 = vpop.permute.xlu0 %62
    %64 = vrot.lane.b32.xlu0 %v54, 64
    %v65 = vpop.permute.xlu0 %64
    %66 = vrot.lane.b32.xlu0 %v55, 64
    %v67 = vpop.permute.xlu0 %66
    %68 = vrot.lane.b32.xlu0 %v56, 64
    %v69 = vpop.permute.xlu0 %68
    %70 = vrot.lane.b32.xlu0 %v57, 64
    %v71 = vpop.permute.xlu0 %70
    %72 = vrot.lane.b32.xlu0 %v58, 64
    %v73 = vpop.permute.xlu0 %72
    %74 = vrot.lane.b32.xlu0 %v59, 64
    %v75 = vpop.permute.xlu0 %74
    %v76 = vld [vmem:[#allocation5] sm:$0xff]
    %v77 = vmul.f32 %v52, %v76
    %v78 = vmul.f32 %v53, %v76
    %v79 = vmul.f32 %v54, %v76
    %v80 = vmul.f32 %v55, %v76
    %v81 = vmul.f32 %v56, %v76
    %v82 = vmul.f32 %v57, %v76
    %v83 = vmul.f32 %v58, %v76
    %v84 = vmul.f32 %v59, %v76
    %v85 = vld [vmem:[#allocation7] sm:$0xff]
    %v86 = vmul.f32 %v61, %v85
    %v87 = vmul.f32 %v63, %v85
    %v88 = vmul.f32 %v65, %v85
    %v89 = vmul.f32 %v67, %v85
    %v90 = vmul.f32 %v69, %v85
    %v91 = vmul.f32 %v71, %v85
    %v92 = vmul.f32 %v73, %v85
    %v93 = vmul.f32 %v75, %v85
    %v94 = vadd.f32 %v77, %v86
    %v95 = vadd.f32 %v78, %v87
    %v96 = vadd.f32 %v79, %v88
    %v97 = vadd.f32 %v80, %v89
    %v98 = vadd.f32 %v81, %v90
    %v99 = vadd.f32 %v82, %v91
    %v100 = vadd.f32 %v83, %v92
    %v101 = vadd.f32 %v84, %v93
    %102 = vst [vmem:[#allocation8] sm:$0xff] %v94
    %103 = vst [vmem:[#allocation8 + $0x8] sm:$0xff] %v95
    %104 = vst [vmem:[#allocation8 + $0x10] sm:$0xff] %v96
    %105 = vst [vmem:[#allocation8 + $0x18] sm:$0xff] %v97
    %106 = vst [vmem:[#allocation8 + $0x20] sm:$0xff] %v98
    %107 = vst [vmem:[#allocation8 + $0x28] sm:$0xff] %v99
    %108 = vst [vmem:[#allocation8 + $0x30] sm:$0xff] %v100
    %109 = vst [vmem:[#allocation8 + $0x38] sm:$0xff] %v101
    // Predicated region
    $region26: #{tpu_custom_call.1} parent=1 // pred_check
      _
    $region27: #{tpu_custom_call.1} parent=1 // pred_check_branch
      %111 = sbr.rel (0) target = $region29
    $region28: #{tpu_custom_call.1} parent=1 // pred_region
      %s113 = ssub.s32 1024, 1024
      %114 = vsyncadd [#allocation4], %s113
      %s115 = sshll.u32 [#allocation8], 4
      %s116 = int_to_ptr.vmem [resolvable:$true] %s115
      %121 = dma.vmem_to_hbm [thread:$0]  %s116, 1024, %s3, [#allocation4], 128, 128, 8
    $region29: #{tpu_custom_call.1} parent=1 // pred_fallthru
      _
    // Predicated region
    $region30: #{tpu_custom_call.1} parent=1 // pred_check
      _
    $region31: #{tpu_custom_call.1} parent=1 // pred_check_branch
      %123 = sbr.rel (0) target = $region33
    $region32: #{tpu_custom_call.1} parent=1 // pred_region
      %124 = dma.done [#allocation4], 1024
    $region33: #{tpu_custom_call.1} parent=1 // pred_fallthru
      _
    %125 = vsyncpa [#allocation3], 1
    %126 = vsyncpa [#allocation6], 1
    %127 = vsyncpa [#allocation4], 1

</llo_original>
